<compile_context>
chip_gen: v7x
topology: tpu7x:2x2x1
jax: 0.10.0
libtpu: 0.0.40
codegen_flags: <defaults>
</compile_context>

<pallas_src>
import functools

import jax
import jax.numpy as jnp
from jax import lax
from jax.experimental import pallas as pl
from jax.experimental.pallas import tpu as pltpu


# ---------------------------------------------------------------------------
# Path 1: Linear(1, 1) — scalar weight/bias in SMEM, batch along lanes (VPU).
# ---------------------------------------------------------------------------
def _scalar_linear_kernel(x_ref, w_ref, b_ref, o_ref):
    # x_ref/o_ref: (1, B) in VMEM (batch on lanes); w_ref/b_ref: (1, 1) in SMEM.
    w = w_ref[0, 0]
    b = b_ref[0, 0]
    o_ref[...] = x_ref[...] * w + b


def _scalar_linear(x, weight, bias):
    B = x.shape[0]
    x_row = x.reshape(1, B)          # lane-dense layout: batch -> lanes
    w2d = weight.reshape(1, 1)
    b2d = bias.reshape(1, 1)
    y_row = pl.pallas_call(
        _scalar_linear_kernel,
        out_shape=jax.ShapeDtypeStruct((1, B), x.dtype),
        in_specs=[
            pl.BlockSpec(memory_space=pltpu.MemorySpace.VMEM),   # x row
            pl.BlockSpec(memory_space=pltpu.MemorySpace.SMEM),   # scalar weight
            pl.BlockSpec(memory_space=pltpu.MemorySpace.SMEM),   # scalar bias
        ],
        out_specs=pl.BlockSpec(memory_space=pltpu.MemorySpace.VMEM),
    )(x_row, w2d, b2d)
    return y_row.reshape(B, 1)


# ---------------------------------------------------------------------------
# Path 2: general Linear(K, N) — tiled MXU matmul, f32 accumulator scratch.
# ---------------------------------------------------------------------------
def _tiled_linear_kernel(x_ref, w_ref, b_ref, o_ref, acc_ref, *, k_size, tk):
    k = pl.program_id(2)

    # Fold the bias into the accumulator init; the epilogue is then pure cast.
    @pl.when(k == 0)
    def _():
        acc_ref[...] = jnp.broadcast_to(b_ref[...], acc_ref.shape)

    x = x_ref[...]
    if k_size % tk != 0:
        # x is NOT pre-padded along K in HBM: zero-mask the K tail of the
        # final K block so stale VMEM padding cannot enter the accumulator.
        # For all other K blocks `valid >= tk`, so the select is a no-op.
        col = lax.broadcasted_iota(jnp.int32, x.shape, dimension=1)
        valid = k_size - k * tk
        x = jnp.where(col < valid, x, jnp.zeros_like(x))

    # Weight is pre-laid-out as (K, N): plain MXU dot, no per-tile transpose.
    acc_ref[...] += jnp.dot(x, w_ref[...], preferred_element_type=jnp.float32)

    @pl.when(k == pl.num_programs(2) - 1)
    def _():
        o_ref[...] = acc_ref[...].astype(o_ref.dtype)


def _tiled_linear(x, weight, bias):
    B, K = x.shape
    N = weight.shape[0]
    out_dtype = x.dtype

    # ---- tile selection ----------------------------------------------------
    Kp = 128 * pl.cdiv(K, 128)
    Np = 128 * pl.cdiv(N, 128)
    # M tile: large enough to amortize per-grid-step overhead, but keep >= 2
    # parallel M steps (v7x has 2 TensorCores) whenever the batch allows.
    tm = min(512, 128 * max(1, pl.cdiv(B, 256)))
    tn = min(512, Np)
    tk = min(1024, Kp)

    # bf16 inputs feed the MXU at full rate and halve HBM/VMEM traffic; the
    # accumulator, bias and final cast stay in f32.
    cdt = jnp.bfloat16 if x.dtype == jnp.float32 else x.dtype
    xc = x.astype(cdt)                                  # no padding copy of x
    # Weight/bias are static across calls: transpose to (K, N), zero-pad to
    # the tile grid and cast ONCE (hoist out of the training loop in real use).
    wt = jnp.pad(weight.T.astype(cdt), ((0, Kp - K), (0, Np - N)))
    bp = jnp.pad(bias.astype(jnp.float32), (0, Np - N)).reshape(1, Np)

    grid = (pl.cdiv(B, tm), Np // tn, Kp // tk)
    kernel = functools.partial(_tiled_linear_kernel, k_size=K, tk=tk)

    y = pl.pallas_call(
        kernel,
        out_shape=jax.ShapeDtypeStruct((B, N), out_dtype),
        grid_spec=pltpu.PrefetchScalarGridSpec(
            num_scalar_prefetch=0,
            grid=grid,
            in_specs=[
                pl.BlockSpec((tm, tk), lambda i, j, k: (i, k)),   # x (unpadded)
                pl.BlockSpec((tk, tn), lambda i, j, k: (k, j)),   # W.T (K, N)
                pl.BlockSpec((1, tn), lambda i, j, k: (0, j)),    # bias row f32
            ],
            out_specs=pl.BlockSpec((tm, tn), lambda i, j, k: (i, j)),
            scratch_shapes=[pltpu.VMEM((tm, tn), jnp.float32)],
        ),
        compiler_params=pltpu.CompilerParams(
            dimension_semantics=("parallel", "parallel", "arbitrary"),
            vmem_limit_bytes=32 * 1024 * 1024,
        ),
    )(xc, wt, bp)
    return y
    # TODO(synk): for large, repeatedly-applied layers on v5e/v6e (128 MiB
    # VMEM), keep the whole bf16 weight resident (full-extent W BlockSpec,
    # grid over M/K only) to stop re-streaming W per M tile; do not apply
    # blindly on v7x (64 MiB physical VMEM).


def linear_forward(x, weight, bias):
    """y = x @ weight.T + bias  (weight in PyTorch (out_features, in_features))."""
    K = x.shape[1]
    N = weight.shape[0]
    if K == 1 and N == 1:
        return _scalar_linear(x, weight, bias)
    return _tiled_linear(x, weight, bias)


if __name__ == "__main__":
    key = jax.random.PRNGKey(0)
    kw, kb, kx2, kw2, kb2 = jax.random.split(key, 5)

    # --- Case 1: the literal bootcamp model, Model(1, 1) on linspace(0,50,50).
    batch, in_features, out_features = 50, 1, 1
    x = jnp.linspace(0.0, 50.0, batch, dtype=jnp.float32).reshape(batch, in_features)
    bound = 1.0 / float(in_features) ** 0.5
    weight = jax.random.uniform(kw, (out_features, in_features), dtype=jnp.float32,
                                minval=-bound, maxval=bound)
    bias = jax.random.uniform(kb, (out_features,), dtype=jnp.float32,
                              minval=-bound, maxval=bound)

    y = linear_forward(x, weight, bias)
    jax.block_until_ready(y)
    y_ref = x @ weight.T + bias
    assert y.shape == (batch, out_features)
    assert jnp.allclose(y, y_ref, atol=1e-5, rtol=1e-5)

    # --- Case 2: general Linear with non-tile-multiple shapes (exercises the
    #     tiled MXU path, unpadded x, in-kernel K-tail masking and masked
    #     M/N-tail stores): (200, 96) @ Linear(96, 72).
    B2, K2, N2 = 200, 96, 72
    x2 = jax.random.normal(kx2, (B2, K2), dtype=jnp.float32)
    bound2 = 1.0 / float(K2) ** 0.5
    w2 = jax.random.uniform(kw2, (N2, K2), dtype=jnp.float32,
                            minval=-bound2, maxval=bound2)
    b2 = jax.random.uniform(kb2, (N2,), dtype=jnp.float32,
                            minval=-bound2, maxval=bound2)

    y2 = linear_forward(x2, w2, b2)
    jax.block_until_ready(y2)
    y2_ref = x2 @ w2.T + b2
    assert y2.shape == (B2, N2)
    # bf16 inputs / f32 accumulation -> loose tolerance vs the f32 reference.
    assert jnp.allclose(y2, y2_ref, atol=3e-2, rtol=3e-2)

    print("KERNEL_OK")
</pallas_src>

<mosaic_0001>
module attributes {stable_mosaic.version = 11 : i64} {
  func.func @_scalar_linear_kernel(%arg0: memref<1x50xf32, #tpu.memory_space<vmem>>, %arg1: memref<1x1xf32, #tpu.memory_space<smem>>, %arg2: memref<1x1xf32, #tpu.memory_space<smem>>, %arg3: memref<1x50xf32, #tpu.memory_space<vmem>>) attributes {dimension_semantics = [], scalar_prefetch = 0 : i64, scratch_operands = 0 : i64, tpu.core_type = #tpu.core_type<tc>} {
    %c0 = arith.constant 0 : index
    %c0_0 = arith.constant 0 : index
    %0 = memref.load %arg1[%c0, %c0_0] : memref<1x1xf32, #tpu.memory_space<smem>>
    %c0_1 = arith.constant 0 : index
    %c0_2 = arith.constant 0 : index
    %1 = memref.load %arg2[%c0_1, %c0_2] : memref<1x1xf32, #tpu.memory_space<smem>>
    %c0_3 = arith.constant 0 : index
    %c0_4 = arith.constant 0 : index
    %2 = vector.load %arg0[%c0_3, %c0_4] : memref<1x50xf32, #tpu.memory_space<vmem>>, vector<1x50xf32>
    %3 = vector.broadcast %0 : f32 to vector<1x50xf32>
    %4 = arith.mulf %2, %3 : vector<1x50xf32>
    %5 = vector.broadcast %1 : f32 to vector<1x50xf32>
    %6 = arith.addf %4, %5 : vector<1x50xf32>
    %c0_5 = arith.constant 0 : index
    %c0_6 = arith.constant 0 : index
    %7 = vector.load %arg3[%c0_5, %c0_6] : memref<1x50xf32, #tpu.memory_space<vmem>>, vector<1x50xf32>
    tpu.vector_store %arg3[%c0_5, %c0_6], %6 {strides = array<i32>} : memref<1x50xf32, #tpu.memory_space<vmem>>, vector<1x50xf32>,
    return
  }
}

</mosaic_0001>

<llo_original>
// kernel: tpu_custom_call.1
$region0: #{tpu_custom_call.1}
  #allocation0 [shape = 'u32[]', space=smem, size = 0x4, offset = 0x4, fixed_abs, tag = 'smem constant byte address 0x4 - core index']
  #allocation1 [shape = 'u32[144,128]{1,0:T(1,128)}', space=vmem, size = 0x12000, scoped, tag = 'internal scratch']
  #allocation2 [shape = 'f32[1,1]{1,0:T(1,128)S(6)}', space=smem, size = 0x200, scoped, tag = 'scoped memory for tpu_custom_call.1']
  #allocation3 [shape = 'f32[1,1]{1,0:T(1,128)S(6)}', space=smem, size = 0x200, scoped, tag = 'scoped memory for tpu_custom_call.1']
  %s0 = inlined_call_operand.vmem [shape: f32[1,50], index: 0, kind: input, shape index: {}]
  %s1 = inlined_call_operand.<no memory space> [shape: f32[1,1], index: 1, kind: input, shape index: {}]
  %s2 = inlined_call_operand.<no memory space> [shape: f32[1,1], index: 2, kind: input, shape index: {}]
  %s3 = inlined_call_operand.hbm [shape: f32[1,50], index: 3, kind: output, shape index: {}]
  %s4 = sld [smem:[#allocation0]]
  $region22: #{tpu_custom_call.1} parent=0
    _
  %s6 = ssub.s32 1, %s4
  %s7 = scalar_select 0, %s6, %s4
  %8 = sst [smem:[#allocation2]] %s1
  %9 = sst [smem:[#allocation3]] %s2
  $region1: #{tpu_custom_call.1} parent=0
    #allocation4 [shape = 'u8[512]{0}', space=vmem, size = 0x400, scoped, tag = 'output window, operand 0, single buffered']
    #allocation5 [shape = 's32[1]{0}', space=sflag, size = 0x4, scoped, tag = 'scoped memory for tpu_custom_call.1']
    %10 = vsyncpa [#allocation5], 0
    // Predicated region
    $region2: #{tpu_custom_call.1} parent=1 // pred_check
      _
    $region3: #{tpu_custom_call.1} parent=1 // pred_check_branch
      %12 = sbr.rel (0) target = $region5
    $region4: #{tpu_custom_call.1} parent=1 // pred_region
      _
    $region5: #{tpu_custom_call.1} parent=1 // pred_fallthru
      _
    // Predicated region
    $region6: #{tpu_custom_call.1} parent=1 // pred_check
      _
    $region7: #{tpu_custom_call.1} parent=1 // pred_check_branch
      %14 = sbr.rel (0) target = $region9
    $region8: #{tpu_custom_call.1} parent=1 // pred_region
      _
    $region9: #{tpu_custom_call.1} parent=1 // pred_fallthru
      _
    // Predicated region
    $region10: #{tpu_custom_call.1} parent=1 // pred_check
      _
    $region11: #{tpu_custom_call.1} parent=1 // pred_check_branch
      %16 = sbr.rel (0) target = $region13
    $region12: #{tpu_custom_call.1} parent=1 // pred_region
      _
    $region13: #{tpu_custom_call.1} parent=1 // pred_fallthru
      _
    %s17 = sld [smem:[#allocation2]]
    %s18 = sld [smem:[#allocation3]]
    %v19 = vld [vmem:[%s0] sm:$0x1]
    %v20 = vstv %s17
    %v21 = vmul.f32 %v19, %v20
    %v22 = vstv %s18
    %v23 = vadd.f32 %v21, %v22
    %vm24 = vcmask 401408
    %25 = vst.msk [vmem:[#allocation4] sm:$0x1] %vm24, %v23
    // Predicated region
    $region14: #{tpu_custom_call.1} parent=1 // pred_check
      _
    $region15: #{tpu_custom_call.1} parent=1 // pred_check_branch
      %27 = sbr.rel (0) target = $region17
    $region16: #{tpu_custom_call.1} parent=1 // pred_region
      %s29 = ssub.s32 16, 16
      %30 = vsyncadd [#allocation5], %s29
      %s32 = sshll.u32 [#allocation4], 4
      %s33 = int_to_ptr.vmem [resolvable:$true] %s32
      %35 = dma.vmem_to_hbm [thread:$0]  %s33, 16, %s3, [#allocation5]
    $region17: #{tpu_custom_call.1} parent=1 // pred_fallthru
      _
    // Predicated region
    $region18: #{tpu_custom_call.1} parent=1 // pred_check
      _
    $region19: #{tpu_custom_call.1} parent=1 // pred_check_branch
      %37 = sbr.rel (0) target = $region21
    $region20: #{tpu_custom_call.1} parent=1 // pred_region
      %38 = dma.done [#allocation5], 16
    $region21: #{tpu_custom_call.1} parent=1 // pred_fallthru
      _
    %39 = vsyncpa [#allocation5], 1

</llo_original>
